<compile_context>
chip_gen: v5e
topology: v5e:2x2
jax: 0.10.0
libtpu: 0.0.40
codegen_flags: <defaults>
</compile_context>

<pallas_src>
import functools

import jax
import jax.numpy as jnp
from jax.experimental import pallas as pl
from jax.experimental.pallas import tpu as pltpu


# ---------------------------------------------------------------------------
# Kernels
# ---------------------------------------------------------------------------

def _fused_kernel(x_ref, w1_ref, b1_ref, w2_ref, b2_ref, o_ref):
    """Weights-resident fast path: one (expert, token-tile) grid point, full
    hidden dim in VMEM -> no accumulator scratch, no init/finalize branches."""
    x = x_ref[0]                                                     # (TS, M)
    h = jnp.dot(x, w1_ref[0], preferred_element_type=jnp.float32)    # (TS, H)
    h = jnp.maximum(h + b1_ref[0], 0.0)
    y = jnp.dot(h.astype(w2_ref.dtype), w2_ref[0],
                preferred_element_type=jnp.float32)                  # (TS, M)
    o_ref[0] = (y + b2_ref[0]).astype(o_ref.dtype)


def _htiled_kernel(x_ref, w1_ref, b1_ref, w2_ref, b2_ref, o_ref, acc_ref):
    """Hidden-dim-streamed path: grid point (expert, token-tile, hidden-tile).
    x / out / f32 accumulator stay resident across the innermost hidden axis."""
    kh = pl.program_id(2)

    @pl.when(kh == 0)
    def _init():
        acc_ref[...] = jnp.zeros_like(acc_ref)

    x = x_ref[0]                                                     # (TS, M)
    h = jnp.dot(x, w1_ref[0], preferred_element_type=jnp.float32)    # (TS, TH)
    h = jnp.maximum(h + b1_ref[0], 0.0)   # per-slice b1 + ReLU: elementwise in H, exact
    acc_ref[...] += jnp.dot(h.astype(w2_ref.dtype), w2_ref[0],
                            preferred_element_type=jnp.float32)

    @pl.when(kh == pl.num_programs(2) - 1)
    def _finalize():
        o_ref[0] = (acc_ref[...] + b2_ref[0]).astype(o_ref.dtype)


# ---------------------------------------------------------------------------
# Tile selection
# ---------------------------------------------------------------------------

def _aligned_divisors(dim, cap, align):
    """Divisors of `dim` that are <= cap and multiples of `align`, descending.
    The full dim is included when it is <= cap (full-extent blocks are legal)."""
    cands = []
    if dim <= cap:
        cands.append(dim)
    top = (min(dim, cap) // align) * align
    for t in range(top, 0, -align):
        if t != dim and dim % t == 0:
            cands.append(t)
    return cands or [dim]


def _choose_tiles(S, M, H, itemsize, budget, want_ts, want_th):
    """Pick (tile_s, tile_h).  tile_s is maximized first (weight HBM traffic ~
    1/tile_s), then prefer the weights-resident fast path (tile_h == H), then
    the largest 128-aligned hidden slice that fits `budget` bytes of VMEM."""

    def fits(ts, th):
        n_kh = -(-H // th)
        vbytes = 2 * 2 * ts * M * itemsize           # x + out blocks, double-buffered
        vbytes += 2 * 2 * M * th * itemsize          # W1 + W2 slices, double-buffered
        vbytes += 2 * (th + M) * itemsize            # b1 slice + b2 (tiny)
        vbytes += ts * th * 4                        # f32 ReLU intermediate
        if n_kh > 1:
            vbytes += ts * M * 4                     # f32 accumulator scratch
        return vbytes <= budget

    ts_cands = _aligned_divisors(S, want_ts, 8)
    th_cands = [H] + [t for t in _aligned_divisors(H, want_th, 128) if t != H]
    for ts in ts_cands:
        for th in th_cands:
            if fits(ts, th):
                return ts, th
    return ts_cands[-1], th_cands[-1]


# ---------------------------------------------------------------------------
# Entry points
# ---------------------------------------------------------------------------

@functools.partial(
    jax.jit,
    static_argnames=("tile_s", "tile_h", "vmem_limit_bytes",
                     "weight_buffers", "x_buffers"))
def seq_experts_forward_em(x_em, w1, b1, w2, b2, *, tile_s=None, tile_h=None,
                           vmem_limit_bytes=None, weight_buffers=None,
                           x_buffers=None):
    """Expert-major core: x_em (E, S, M) -> (E, S, M).  Preferred entry point
    (keep activations expert-major end-to-end; the (S,E,M) wrapper below costs
    two extra full HBM passes in transposes).

    Tuning knobs (auto-picked from VMEM capacity when None):
      tile_s            intensity knob; ~1024 on v5e/v6e (128 MiB), ~512 on v7x (64 MiB).
      tile_h            hidden streaming slice (128-aligned); ==H -> fused fast path.
      vmem_limit_bytes  always set (default scoped limit 16/32 MiB rejects big tiles).
      weight_buffers    deeper W1/W2 pipelining (e.g. 3 on v5e); avoid >2 on v7x.
      x_buffers         1 -> single-buffer the kh-invariant x/out/b2 blocks (v7x headroom).
    """
    E, S, M = x_em.shape
    H = w1.shape[-1]
    itemsize = jnp.dtype(x_em.dtype).itemsize

    # ---- per-chip defaults keyed on VMEM capacity --------------------------
    try:
        vmem_cap = int(pltpu.get_tpu_info().vmem_capacity_bytes)
    except Exception:                       # conservative fallback (v7x-sized)
        vmem_cap = 64 << 20
    if vmem_limit_bytes is None:
        vmem_limit_bytes = min(int(vmem_cap * 0.78), 100 << 20)
    if tile_s is None or tile_h is None:
        big_vmem = vmem_cap >= (96 << 20)             # v5e/v6e vs v7x
        want_ts = 1024 if big_vmem else 512
        want_th = 2048 if big_vmem else 1024
        a_ts, a_th = _choose_tiles(S, M, H, itemsize,
                                   budget=int(vmem_limit_bytes * 0.9),
                                   want_ts=want_ts, want_th=want_th)
        if tile_s is None:
            tile_s = a_ts
        if tile_h is None:
            tile_h = a_th

    # Mosaic (8, 128) block constraint (or full-extent blocks).
    assert S % tile_s == 0 and (tile_s == S or tile_s % 8 == 0), (S, tile_s)
    assert H % tile_h == 0 and (tile_h == H or tile_h % 128 == 0), (H, tile_h)

    n_s = S // tile_s
    n_kh = H // tile_h

    # Megacore balance (v7x): with odd / single local-expert counts put the
    # token-tile axis outermost so both TensorCores get token tiles.
    expert_outer = (E > 1 and E % 2 == 0) or n_s == 1

    def _imap(f):
        """Canonicalize index maps to logical (e, i, kh) regardless of grid order."""
        if n_kh > 1:
            return (lambda e, i, kh: f(e, i, kh)) if expert_outer \
                else (lambda i, e, kh: f(e, i, kh))
        return (lambda e, i: f(e, i, 0)) if expert_outer \
            else (lambda i, e: f(e, i, 0))

    def _spec(shape, f, buffers=None):
        idx = _imap(f)
        if buffers is None:
            return pl.BlockSpec(shape, idx)
        return pl.BlockSpec(shape, idx, pipeline_mode=pl.Buffered(buffers))

    # kh-invariance only exists when the hidden axis is actually tiled.
    xo_buf = x_buffers if n_kh > 1 else None

    x_spec = _spec((1, tile_s, M), lambda e, i, kh: (e, i, 0), xo_buf)
    w1_spec = _spec((1, M, tile_h), lambda e, i, kh: (e, 0, kh), weight_buffers)
    b1_spec = _spec((1, 1, tile_h), lambda e, i, kh: (e, 0, kh))
    w2_spec = _spec((1, tile_h, M), lambda e, i, kh: (e, kh, 0), weight_buffers)
    b2_spec = _spec((1, 1, M), lambda e, i, kh: (e, 0, 0), xo_buf)
    o_spec = _spec((1, tile_s, M), lambda e, i, kh: (e, i, 0), xo_buf)

    # Accurate HBM-traffic estimate: weights are re-streamed once per token
    # tile (their index maps ignore the token axis).
    isz = lambda a: jnp.dtype(a.dtype).itemsize
    io_bytes = 2 * E * S * M * itemsize
    w_bytes = (w1.size * isz(w1) + w2.size * isz(w2)
               + b1.size * isz(b1) + b2.size * isz(b2))
    cost = pl.CostEstimate(flops=4 * E * S * M * H, transcendentals=0,
                           bytes_accessed=io_bytes + n_s * w_bytes)

    if n_kh == 1:
        kernel = _fused_kernel
        grid = (E, n_s) if expert_outer else (n_s, E)
        semantics = ("parallel", "parallel")
        scratch = []
    else:
        kernel = _htiled_kernel
        grid = (E, n_s, n_kh) if expert_outer else (n_s, E, n_kh)
        semantics = ("parallel", "parallel", "arbitrary")
        scratch = [pltpu.VMEM((tile_s, M), jnp.float32)]

    return pl.pallas_call(
        kernel,
        out_shape=jax.ShapeDtypeStruct((E, S, M), x_em.dtype),
        grid_spec=pltpu.PrefetchScalarGridSpec(
            num_scalar_prefetch=0,
            grid=grid,
            in_specs=[x_spec, w1_spec, b1_spec, w2_spec, b2_spec],
            out_specs=o_spec,
            scratch_shapes=scratch),
        compiler_params=pltpu.CompilerParams(
            dimension_semantics=semantics,
            vmem_limit_bytes=int(vmem_limit_bytes)),
        cost_estimate=cost,
    )(x_em, w1, b1, w2, b2)


@functools.partial(
    jax.jit,
    static_argnames=("tile_s", "tile_h", "vmem_limit_bytes",
                     "weight_buffers", "x_buffers"))
def seq_experts_forward(inputs, w1, b1, w2, b2, *, tile_s=None, tile_h=None,
                        vmem_limit_bytes=None, weight_buffers=None,
                        x_buffers=None):
    """Module-compatible layout: inputs (S, E, M) -> (S, E, M), like
    SeqExperts.forward (split dim=1 -> expert -> concat dim=1).

    NOTE: the two transposes here are extra full HBM passes over the
    activations; in a real model keep the tensor expert-major and call
    seq_experts_forward_em directly (or fuse the layout change into the MoE
    dispatch/combine)."""
    x_em = jnp.transpose(inputs, (1, 0, 2))
    out_em = seq_experts_forward_em(
        x_em, w1, b1, w2, b2, tile_s=tile_s, tile_h=tile_h,
        vmem_limit_bytes=vmem_limit_bytes, weight_buffers=weight_buffers,
        x_buffers=x_buffers)
    return jnp.transpose(out_em, (1, 0, 2))


# ---------------------------------------------------------------------------
# Reference + test
# ---------------------------------------------------------------------------

def _reference(inputs, w1, b1, w2, b2):
    """Pure-JAX f32 reference mirroring the PyTorch loop (split/concat dim=1)."""
    S, E, M = inputs.shape
    outs = []
    for e in range(E):
        chunk = inputs[:, e, :].astype(jnp.float32)                    # (S, M)
        h = jnp.maximum(chunk @ w1[e].astype(jnp.float32)
                        + b1[e].astype(jnp.float32), 0.0)              # (S, H)
        outs.append(h @ w2[e].astype(jnp.float32)
                    + b2[e].astype(jnp.float32))                       # (S, M)
    return jnp.stack(outs, axis=1)                                     # (S, E, M)


if __name__ == "__main__":
    # Small, lane-aligned shapes: S=32 tokens, E=4 experts, M=128, H=256.
    S, E, M, H = 32, 4, 128, 256

    key = jax.random.PRNGKey(0)
    k_x, k_w1, k_b1, k_w2, k_b2 = jax.random.split(key, 5)

    inputs = jax.random.normal(k_x, (S, E, M), jnp.float32)
    w1 = jax.random.normal(k_w1, (E, M, H), jnp.float32) * 0.05
    b1 = jax.random.normal(k_b1, (E, 1, H), jnp.float32) * 0.05
    w2 = jax.random.normal(k_w2, (E, H, M), jnp.float32) * 0.05
    b2 = jax.random.normal(k_b2, (E, 1, M), jnp.float32) * 0.05

    ref = _reference(inputs, w1, b1, w2, b2)
    ref_em = jnp.transpose(ref, (1, 0, 2))

    # 1) Auto per-chip config via the preferred expert-major entry point.
    #    (Picks the weights-resident fused fast path at these small shapes.)
    x_em = jnp.transpose(inputs, (1, 0, 2))
    out_em = jax.block_until_ready(seq_experts_forward_em(x_em, w1, b1, w2, b2))
    assert out_em.shape == (E, S, M)
    assert jnp.allclose(out_em, ref_em, atol=1e-2, rtol=1e-2), "auto-config mismatch"

    # 2) Module-layout wrapper with explicit small tiles so the H-streamed
    #    accumulator path (2 hidden-dim grid steps) is exercised.
    out = jax.block_until_ready(
        seq_experts_forward(inputs, w1, b1, w2, b2, tile_s=16, tile_h=128))
    assert out.shape == (S, E, M)
    assert jnp.allclose(out, ref, atol=1e-2, rtol=1e-2), "h-tiled mismatch"

    # 3) Odd local-expert count -> token-tile-outer grid (megacore balance path).
    out3 = jax.block_until_ready(
        seq_experts_forward_em(x_em[:3], w1[:3], b1[:3], w2[:3], b2[:3],
                               tile_s=16, tile_h=128))
    assert jnp.allclose(out3, ref_em[:3], atol=1e-2, rtol=1e-2), "odd-E mismatch"

    # 4) bf16 activations + weights (production MXU path), f32 accumulation.
    to_bf16 = lambda a: a.astype(jnp.bfloat16)
    out_bf16 = jax.block_until_ready(seq_experts_forward(
        to_bf16(inputs), to_bf16(w1), to_bf16(b1), to_bf16(w2), to_bf16(b2),
        tile_s=16, tile_h=128))
    assert out_bf16.dtype == jnp.bfloat16
    assert jnp.allclose(out_bf16.astype(jnp.float32), ref,
                        atol=1e-1, rtol=1e-1), "bf16 mismatch"

    # TODO(synk): the `expert_input_nums is not None` branch (ragged per-expert
    # token splits over a list of inputs) needs data-dependent offsets via
    # PrefetchScalarGridSpec scalar prefetch; not implemented here.
    print("KERNEL_OK")
</pallas_src>

<mosaic_0001>
module attributes {stable_mosaic.version = 11 : i64} {
  func.func @_fused_kernel(%arg0: i32, %arg1: i32, %arg2: memref<1x32x128xf32, #tpu.memory_space<vmem>>, %arg3: memref<1x128x256xf32, #tpu.memory_space<vmem>>, %arg4: memref<1x1x256xf32, #tpu.memory_space<vmem>>, %arg5: memref<1x256x128xf32, #tpu.memory_space<vmem>>, %arg6: memref<1x1x128xf32, #tpu.memory_space<vmem>>, %arg7: memref<1x32x128xf32, #tpu.memory_space<vmem>>) attributes {dimension_semantics = [#tpu.dimension_semantics<parallel>, #tpu.dimension_semantics<parallel>], iteration_bounds = array<i64: 4, 1>, scalar_prefetch = 0 : i64, scratch_operands = 0 : i64, tpu.core_type = #tpu.core_type<tc>, window_params = [{transform_indices = @transform_0, window_bounds = array<i64: 1, 32, 128>}, {transform_indices = @transform_1, window_bounds = array<i64: 1, 128, 256>}, {transform_indices = @transform_2, window_bounds = array<i64: 1, 1, 256>}, {transform_indices = @transform_3, window_bounds = array<i64: 1, 256, 128>}, {transform_indices = @transform_4, window_bounds = array<i64: 1, 1, 128>}, {transform_indices = @transform_5, window_bounds = array<i64: 1, 32, 128>}]} {
    %c0 = arith.constant 0 : index
    %c0_0 = arith.constant 0 : index
    %c0_1 = arith.constant 0 : index
    %0 = vector.load %arg2[%c0, %c0_0, %c0_1] : memref<1x32x128xf32, #tpu.memory_space<vmem>>, vector<1x32x128xf32>
    %1 = vector.shape_cast %0 : vector<1x32x128xf32> to vector<32x128xf32>
    %c0_2 = arith.constant 0 : index
    %c0_3 = arith.constant 0 : index
    %c0_4 = arith.constant 0 : index
    %2 = vector.load %arg3[%c0_2, %c0_3, %c0_4] : memref<1x128x256xf32, #tpu.memory_space<vmem>>, vector<1x128x256xf32>
    %3 = vector.shape_cast %2 : vector<1x128x256xf32> to vector<128x256xf32>
    %cst = arith.constant dense<0.000000e+00> : vector<32x256xf32>
    %4 = tpu.matmul %1, %3, %cst {dimension_numbers = #tpu.dot_dimension_numbers<[1], [0], [0], [1], [0, 0, 1, 1], [], []>} : vector<32x128xf32>, vector<128x256xf32>, vector<32x256xf32> -> vector<32x256xf32>
    %c0_5 = arith.constant 0 : index
    %c0_6 = arith.constant 0 : index
    %c0_7 = arith.constant 0 : index
    %5 = vector.load %arg4[%c0_5, %c0_6, %c0_7] : memref<1x1x256xf32, #tpu.memory_space<vmem>>, vector<1x1x256xf32>
    %6 = vector.shape_cast %5 : vector<1x1x256xf32> to vector<1x256xf32>
    %7 = vector.broadcast %6 : vector<1x256xf32> to vector<32x256xf32>
    %8 = arith.addf %4, %7 : vector<32x256xf32>
    %cst_8 = arith.constant 0.000000e+00 : f32
    %9 = vector.broadcast %cst_8 : f32 to vector<32x256xf32>
    %10 = arith.maximumf %8, %9 : vector<32x256xf32>
    %c0_9 = arith.constant 0 : index
    %c0_10 = arith.constant 0 : index
    %c0_11 = arith.constant 0 : index
    %11 = vector.load %arg5[%c0_9, %c0_10, %c0_11] : memref<1x256x128xf32, #tpu.memory_space<vmem>>, vector<1x256x128xf32>
    %12 = vector.shape_cast %11 : vector<1x256x128xf32> to vector<256x128xf32>
    %cst_12 = arith.constant dense<0.000000e+00> : vector<32x128xf32>
    %13 = tpu.matmul %10, %12, %cst_12 {dimension_numbers = #tpu.dot_dimension_numbers<[1], [0], [0], [1], [0, 0, 1, 1], [], []>} : vector<32x256xf32>, vector<256x128xf32>, vector<32x128xf32> -> vector<32x128xf32>
    %c0_13 = arith.constant 0 : index
    %c0_14 = arith.constant 0 : index
    %c0_15 = arith.constant 0 : index
    %14 = vector.load %arg6[%c0_13, %c0_14, %c0_15] : memref<1x1x128xf32, #tpu.memory_space<vmem>>, vector<1x1x128xf32>
    %15 = vector.shape_cast %14 : vector<1x1x128xf32> to vector<1x128xf32>
    %16 = vector.broadcast %15 : vector<1x128xf32> to vector<32x128xf32>
    %17 = arith.addf %13, %16 : vector<32x128xf32>
    %c0_16 = arith.constant 0 : index
    %c0_17 = arith.constant 0 : index
    %c0_18 = arith.constant 0 : index
    %18 = vector.load %arg7[%c0_16, %c0_17, %c0_18] : memref<1x32x128xf32, #tpu.memory_space<vmem>>, vector<1x32x128xf32>
    %19 = vector.shape_cast %18 : vector<1x32x128xf32> to vector<32x128xf32>
    %20 = vector.shape_cast %17 : vector<32x128xf32> to vector<1x32x128xf32>
    tpu.vector_store %arg7[%c0_16, %c0_17, %c0_18], %20 {strides = array<i32>} : memref<1x32x128xf32, #tpu.memory_space<vmem>>, vector<1x32x128xf32>,
    return
  }
  func.func @transform_0(%arg0: i32, %arg1: i32) -> (i32, i32, i32) {
    %c0_i32 = arith.constant 0 : i32
    %c0_i32_0 = arith.constant 0 : i32
    return %arg0, %arg1, %c0_i32 : i32, i32, i32
  }
  func.func @transform_1(%arg0: i32, %arg1: i32) -> (i32, i32, i32) {
    %c0_i32 = arith.constant 0 : i32
    %c0_i32_0 = arith.constant 0 : i32
    %c0_i32_1 = arith.constant 0 : i32
    return %arg0, %c0_i32, %c0_i32_0 : i32, i32, i32
  }
  func.func @transform_2(%arg0: i32, %arg1: i32) -> (i32, i32, i32) {
    %c0_i32 = arith.constant 0 : i32
    %c0_i32_0 = arith.constant 0 : i32
    %c0_i32_1 = arith.constant 0 : i32
    return %arg0, %c0_i32, %c0_i32_0 : i32, i32, i32
  }
  func.func @transform_3(%arg0: i32, %arg1: i32) -> (i32, i32, i32) {
    %c0_i32 = arith.constant 0 : i32
    %c0_i32_0 = arith.constant 0 : i32
    %c0_i32_1 = arith.constant 0 : i32
    return %arg0, %c0_i32, %c0_i32_0 : i32, i32, i32
  }
  func.func @transform_4(%arg0: i32, %arg1: i32) -> (i32, i32, i32) {
    %c0_i32 = arith.constant 0 : i32
    %c0_i32_0 = arith.constant 0 : i32
    %c0_i32_1 = arith.constant 0 : i32
    return %arg0, %c0_i32, %c0_i32_0 : i32, i32, i32
  }
  func.func @transform_5(%arg0: i32, %arg1: i32) -> (i32, i32, i32) {
    %c0_i32 = arith.constant 0 : i32
    %c0_i32_0 = arith.constant 0 : i32
    return %arg0, %arg1, %c0_i32 : i32, i32, i32
  }
}

</mosaic_0001>

<llo_original>
// kernel: seq_experts_forward_em.1
$region0: #{seq_experts_forward_em.1}
  #allocation0 [shape = 'u32[]', space=smem, size = 0x4, offset = 0x4, fixed_abs, tag = 'smem constant byte address 0x4 - core index']
  #allocation1 [shape = 'u32[72,128]{1,0:T(1,128)}', space=vmem, size = 0x9000, scoped, tag = 'internal scratch']
  %s0 = inlined_call_operand.hbm [shape: f32[4,32,128], index: 0, kind: input, shape index: {}]
  %s1 = inlined_call_operand.hbm [shape: f32[4,128,256], index: 1, kind: input, shape index: {}]
  %s2 = inlined_call_operand.hbm [shape: f32[4,1,256], index: 2, kind: input, shape index: {}]
  %s3 = inlined_call_operand.hbm [shape: f32[4,256,128], index: 3, kind: input, shape index: {}]
  %s4 = inlined_call_operand.hbm [shape: f32[4,1,128], index: 4, kind: input, shape index: {}]
  %s5 = inlined_call_operand.hbm [shape: f32[4,32,128], index: 5, kind: output, shape index: {}]
  %s6 = sld [smem:[#allocation0]]
  $region73: #{seq_experts_forward_em.1} parent=0
    _
  %s8 = ssub.s32 1, %s6
  %s9 = scalar_select 0, %s8, %s6
  $region1: #{seq_experts_forward_em.1} parent=0
    #allocation2 [shape = 'u8[32768]{0}', space=vmem, size = 0x8000, scoped, tag = 'input window, operand 0']
    #allocation3 [shape = 's32[2]{0}', space=sflag, size = 0x8, scoped, tag = 'scoped memory for seq_experts_forward_em.1']
    #allocation4 [shape = 's32[2]{0}', space=sflag, size = 0x8, scoped, tag = 'scoped memory for seq_experts_forward_em.1']
    #allocation5 [shape = 'u8[262144]{0}', space=vmem, size = 0x40000, scoped, tag = 'input window, operand 1']
    #allocation6 [shape = 's32[2]{0}', space=sflag, size = 0x8, scoped, tag = 'scoped memory for seq_experts_forward_em.1']
    #allocation7 [shape = 'u8[2048]{0}', space=vmem, size = 0x800, scoped, tag = 'input window, operand 2']
    #allocation8 [shape = 'u8[262144]{0}', space=vmem, size = 0x40000, scoped, tag = 'input window, operand 3']
    #allocation9 [shape = 's32[2]{0}', space=sflag, size = 0x8, scoped, tag = 'scoped memory for seq_experts_forward_em.1']
    #allocation10 [shape = 'u8[1024]{0}', space=vmem, size = 0x400, scoped, tag = 'input window, operand 4']
    #allocation11 [shape = 'u8[32768]{0}', space=vmem, size = 0x8000, scoped, tag = 'output window, operand 0']
    %10 = vsyncpa [#allocation3], 0
    %s11 = scalar_lea.sflag [#allocation3], 1
    %12 = vsyncpa %s11, 0
    %13 = vsyncpa [#allocation6], 0
    %s14 = scalar_lea.sflag [#allocation6], 1
    %15 = vsyncpa %s14, 0
    %16 = vsyncpa [#allocation9], 0
    %s17 = scalar_lea.sflag [#allocation9], 1
    %18 = vsyncpa %s17, 0
    %19 = vsyncpa [#allocation4], 0
    %s20 = scalar_lea.sflag [#allocation4], 1
    %21 = vsyncpa %s20, 0
    loop: start=0, step=1, limit=6
    $region2: #{seq_experts_forward_em.1} parent=1 // loop_pre_header
      _
    $region3: #{seq_experts_forward_em.1} parent=1 // loop_header
      %s23 = sphi 0, %s27
      %p24 = scmp.ge.s32.totalorder %s23, 6
      %s30 = sphi 0, %s42
      %s31 = sphi 0, %s38
      %s32 = sphi 0, %s30
      %s33 = sphi 0, %s31
      %s34 = sphi 0, %s32
      %s35 = sphi 0, %s33
      %s47 = sphi 0, %s49
      %s50 = sphi 0, %s47
      %s51 = sphi 0, %s50
      %s67 = sphi 0, %s51
      %s73 = sphi 0, %s75
      %s76 = sphi 0, %s73
      %s77 = sphi 0, %s76
      %s93 = sphi 0, %s77
      %s99 = sphi 0, %s101
      %s102 = sphi 0, %s99
      %s103 = sphi 0, %s102
      %s119 = sphi 0, %s103
      %s125 = sphi 0, %s127
      %s128 = sphi 0, %s125
      %s129 = sphi 0, %s128
      %s145 = sphi 0, %s129
      %s151 = sphi 0, %s153
      %s154 = sphi 0, %s151
      %s155 = sphi 0, %s154
      %s171 = sphi 0, %s155
      %s179 = sphi 0, %s181
      %s182 = sphi 0, %s179
      %s183 = sphi 0, %s182
      %s199 = sphi 0, %s183
    $region4: #{seq_experts_forward_em.1} parent=1 // loop_header_branch
      %26 = sbr.rel (%p24) target = $region8
    $region5: #{seq_experts_forward_em.1} parent=1 // loop_body
      %s28 = ssub.s32 %s23, 1
      %s29 = ssub.s32 %s23, 2
      %s36 = sadd.s32 1, %s31
      %p37 = scmp.ge.s32.totalorder %s36, 1
      %s38 = scalar_select %p37, 0, %s36
      %s39 = sadd.s32 1, %s30
      %s40 = scalar_select %p37, %s39, %s30
      %p41 = scmp.ge.s32.totalorder %s40, 4
      %s42 = scalar_select %p41, 0, %s40
      %s43 = ssub.s32 %s30, %s42
      %s44 = ssub.s32 %s31, %s38
      %s45 = sor.u32 %s43, %s44
      %p46 = scmp.eq.s32.totalorder %s45, 0
      %s48 = sadd.s32 %s47, 1
      %s49 = scalar_select %p46, %s47, %s48
      %p52 = pneg %p46
      %p53 = scmp.eq.s32.totalorder %s23, 3
      %p54 = por %p52, %p53
      %p55 = scmp.ne.s32.totalorder %s47, %s50
      %p56 = scmp.eq.s32.totalorder %s23, 0
      %p57 = por %p55, %p56
      %p58 = scmp.ne.s32.totalorder %s47, %s50
      %p59 = scmp.eq.s32.totalorder %s28, 3
      %p60 = por %p58, %p59
      %p61 = scmp.ne.s32.totalorder %s50, %s51
      %p62 = scmp.eq.s32.totalorder %s28, 0
      %p63 = por %p61, %p62
      %p64 = scmp.ne.s32.totalorder %s50, %s51
      %p65 = scmp.eq.s32.totalorder %s29, 3
      %p66 = por %p64, %p65
      %p68 = scmp.ne.s32.totalorder %s51, %s67
      %p69 = scmp.eq.s32.totalorder %s29, 0
      %p70 = por %p68, %p69
      %s71 = ssub.s32 %s30, %s42
      %p72 = scmp.eq.s32.totalorder %s71, 0
      %s74 = sadd.s32 %s73, 1
      %s75 = scalar_select %p72, %s73, %s74
      %p78 = pneg %p72
      %p79 = scmp.eq.s32.totalorder %s23, 3
      %p80 = por %p78, %p79
      %p81 = scmp.ne.s32.totalorder %s73, %s76
      %p82 = scmp.eq.s32.totalorder %s23, 0
      %p83 = por %p81, %p82
      %p84 = scmp.ne.s32.totalorder %s73, %s76
      %p85 = scmp.eq.s32.totalorder %s28, 3
      %p86 = por %p84, %p85
      %p87 = scmp.ne.s32.totalorder %s76, %s77
      %p88 = scmp.eq.s32.totalorder %s28, 0
      %p89 = por %p87, %p88
      %p90 = scmp.ne.s32.totalorder %s76, %s77
      %p91 = scmp.eq.s32.totalorder %s29, 3
      %p92 = por %p90, %p91
      %p94 = scmp.ne.s32.totalorder %s77, %s93
      %p95 = scmp.eq.s32.totalorder %s29, 0
      %p96 = por %p94, %p95
      %s97 = ssub.s32 %s30, %s42
      %p98 = scmp.eq.s32.totalorder %s97, 0
      %s100 = sadd.s32 %s99, 1
      %s101 = scalar_select %p98, %s99, %s100
      %p104 = pneg %p98
      %p105 = scmp.eq.s32.totalorder %s23, 3
      %p106 = por %p104, %p105
      %p107 = scmp.ne.s32.totalorder %s99, %s102
      %p108 = scmp.eq.s32.totalorder %s23, 0
      %p109 = por %p107, %p108
      %p110 = scmp.ne.s32.totalorder %s99, %s102
      %p111 = scmp.eq.s32.totalorder %s28, 3
      %p112 = por %p110, %p111
      %p113 = scmp.ne.s32.totalorder %s102, %s103
      %p114 = scmp.eq.s32.totalorder %s28, 0
      %p115 = por %p113, %p114
      %p116 = scmp.ne.s32.totalorder %s102, %s103
      %p117 = scmp.eq.s32.totalorder %s29, 3
      %p118 = por %p116, %p117
      %p120 = scmp.ne.s32.totalorder %s103, %s119
      %p121 = scmp.eq.s32.totalorder %s29, 0
      %p122 = por %p120, %p121
      %s123 = ssub.s32 %s30, %s42
      %p124 = scmp.eq.s32.totalorder %s123, 0
      %s126 = sadd.s32 %s125, 1
      %s127 = scalar_select %p124, %s125, %s126
      %p130 = pneg %p124
      %p131 = scmp.eq.s32.totalorder %s23, 3
      %p132 = por %p130, %p131
      %p133 = scmp.ne.s32.totalorder %s125, %s128
      %p134 = scmp.eq.s32.totalorder %s23, 0
      %p135 = por %p133, %p134
      %p136 = scmp.ne.s32.totalorder %s125, %s128
      %p137 = scmp.eq.s32.totalorder %s28, 3
      %p138 = por %p136, %p137
      %p139 = scmp.ne.s32.totalorder %s128, %s129
      %p140 = scmp.eq.s32.totalorder %s28, 0
      %p141 = por %p139, %p140
      %p142 = scmp.ne.s32.totalorder %s128, %s129
      %p143 = scmp.eq.s32.totalorder %s29, 3
      %p144 = por %p142, %p143
      %p146 = scmp.ne.s32.totalorder %s129, %s145
      %p147 = scmp.eq.s32.totalorder %s29, 0
      %p148 = por %p146, %p147
      %s149 = ssub.s32 %s30, %s42
      %p150 = scmp.eq.s32.totalorder %s149, 0
      %s152 = sadd.s32 %s151, 1
      %s153 = scalar_select %p150, %s151, %s152
      %p156 = pneg %p150
      %p157 = scmp.eq.s32.totalorder %s23, 3
      %p158 = por %p156, %p157
      %p159 = scmp.ne.s32.totalorder %s151, %s154
      %p160 = scmp.eq.s32.totalorder %s23, 0
      %p161 = por %p159, %p160
      %p162 = scmp.ne.s32.totalorder %s151, %s154
      %p163 = scmp.eq.s32.totalorder %s28, 3
      %p164 = por %p162, %p163
      %p165 = scmp.ne.s32.totalorder %s154, %s155
      %p166 = scmp.eq.s32.totalorder %s28, 0
      %p167 = por %p165, %p166
      %p168 = scmp.ne.s32.totalorder %s154, %s155
      %p169 = scmp.eq.s32.totalorder %s29, 3
      %p170 = por %p168, %p169
      %p172 = scmp.ne.s32.totalorder %s155, %s171
      %p173 = scmp.eq.s32.totalorder %s29, 0
      %p174 = por %p172, %p173
      %s175 = ssub.s32 %s30, %s42
      %s176 = ssub.s32 %s31, %s38
      %s177 = sor.u32 %s175, %s176
      %p178 = scmp.eq.s32.totalorder %s177, 0
      %s180 = sadd.s32 %s179, 1
      %s181 = scalar_select %p178, %s179, %s180
      %p184 = pneg %p178
      %p185 = scmp.eq.s32.totalorder %s23, 3
      %p186 = por %p184, %p185
      %p187 = scmp.ne.s32.totalorder %s179, %s182
      %p188 = scmp.eq.s32.totalorder %s23, 0
      %p189 = por %p187, %p188
      %p190 = scmp.ne.s32.totalorder %s179, %s182
      %p191 = scmp.eq.s32.totalorder %s28, 3
      %p192 = por %p190, %p191
      %p193 = scmp.ne.s32.totalorder %s182, %s183
      %p194 = scmp.eq.s32.totalorder %s28, 0
      %p195 = por %p193, %p194
      %p196 = scmp.ne.s32.totalorder %s182, %s183
      %p197 = scmp.eq.s32.totalorder %s29, 3
      %p198 = por %p196, %p197
      %p200 = scmp.ne.s32.totalorder %s183, %s199
      %p201 = scmp.eq.s32.totalorder %s29, 0
      %p202 = por %p200, %p201
      %p203 = scmp.le.s32.totalorder 1, %s23
      %p204 = scmp.lt.s32.totalorder %s23, 5
      %p205 = pnand %p203, %p204
      %p206 = pneg %p205
      // Predicated region
      $region9: #{seq_experts_forward_em.1} parent=5 // pred_check
        _
      $region10: #{seq_experts_forward_em.1} parent=5 // pred_check_branch
        %208 = sbr.rel (%p205) target = $region12
      $region11: #{seq_experts_forward_em.1} parent=5 // pred_region
        %s209 = ssub.s32 %s23, 1
      $region12: #{seq_experts_forward_em.1} parent=5 // pred_fallthru
        _
      %p210 = scmp.lt.s32.totalorder %s23, 4
      // Predicated region
      $region13: #{seq_experts_forward_em.1} parent=5 // pred_check
        %p211 = pneg %p210
      $region14: #{seq_experts_forward_em.1} parent=5 // pred_check_branch
        %213 = sbr.rel (%p211) target = $region16
      $region15: #{seq_experts_forward_em.1} parent=5 // pred_region
        // Predicated region
        $region17: #{seq_experts_forward_em.1} parent=15 // pred_check
          %p214 = pneg %p57
        $region18: #{seq_experts_forward_em.1} parent=15 // pred_check_branch
          %216 = sbr.rel (%p214) target = $region20
        $region19: #{seq_experts_forward_em.1} parent=15 // pred_region
          %s217 = sand.u32 %s47, 1
          %s218 = scalar_lea.sflag [#allocation3], %s217
          %s219 = sand.u32 %s47, 1
          %s220 = smul.addr %s219, 32
          %s221 = scalar_lea.vmem [#allocation2], %s220
          %s222 = smul.u32 4, %s31
          %224 = vsyncadd %s218, 0
          %s225 = smul.addr %s30, 4
          %s226 = sadd.s32 %s222, %s225
          %s227 = smul.addr %s226, 8
          %s228 = scalar_lea.hbm %s0, %s227
          %s229 = sshll.u32 %s228, 4
          %s230 = int_to_ptr.hbm [resolvable:$true] %s229
          %s231 = sshll.u32 %s221, 4
          %s232 = int_to_ptr.vmem [resolvable:$true] %s231
          %237 = dma.hbm_to_vmem [thread:$0]  %s230, 512, %s232, %s218, 128, 128, 8
        $region20: #{seq_experts_forward_em.1} parent=15 // pred_fallthru
          _
        // Predicated region
        $region21: #{seq_experts_forward_em.1} parent=15 // pred_check
          %p238 = pneg %p83
        $region22: #{seq_experts_forward_em.1} parent=15 // pred_check_branch
          %240 = sbr.rel (%p238) target = $region24
        $region23: #{seq_experts_forward_em.1} parent=15 // pred_region
          %s241 = sand.u32 %s23, 1
          %s242 = scalar_lea.sflag [#allocation6], %s241
          %s243 = sand.u32 %s73, 1
          %s244 = smul.addr %s243, 256
          %s245 = scalar_lea.vmem [#allocation5], %s244
          %247 = vsyncadd %s242, 0
          %s248 = smul.addr %s30, 32
          %s249 = smul.addr %s248, 8
          %s250 = scalar_lea.hbm %s1, %s249
          %s251 = sshll.u32 %s250, 4
          %s252 = int_to_ptr.hbm [resolvable:$true] %s251
          %s253 = sshll.u32 %s245, 4
          %s254 = int_to_ptr.vmem [resolvable:$true] %s253
          %259 = dma.hbm_to_vmem [thread:$0]  %s252, 4096, %s254, %s242, 256, 256, 16
        $region24: #{seq_experts_forward_em.1} parent=15 // pred_fallthru
          _
        // Predicated region
        $region25: #{seq_experts_forward_em.1} parent=15 // pred_check
          %p260 = pneg %p109
        $region26: #{seq_experts_forward_em.1} parent=15 // pred_check_branch
          %262 = sbr.rel (%p260) target = $region28
        $region27: #{seq_experts_forward_em.1} parent=15 // pred_region
          %s263 = sand.u32 %s23, 1
          %s264 = scalar_lea.sflag [#allocation6], %s263
          %s265 = sand.u32 %s99, 1
          %s266 = smul.addr %s265, 2
          %s267 = scalar_lea.vmem [#allocation7], %s266
          %269 = vsyncadd %s264, 0
          %s270 = smul.addr %s30, 2
          %s271 = scalar_lea.hbm %s2, %s270
          %s273 = sshll.u32 %s271, 4
          %s274 = int_to_ptr.hbm [resolvable:$true] %s273
          %s275 = sshll.u32 %s267, 4
          %s276 = int_to_ptr.vmem [resolvable:$true] %s275
          %278 = dma.hbm_to_vmem [thread:$0]  %s274, 32, %s276, %s264
        $region28: #{seq_experts_forward_em.1} parent=15 // pred_fallthru
          _
        // Predicated region
        $region29: #{seq_experts_forward_em.1} parent=15 // pred_check
          %p279 = pneg %p135
        $region30: #{seq_experts_forward_em.1} parent=15 // pred_check_branch
          %281 = sbr.rel (%p279) target = $region32
        $region31: #{seq_experts_forward_em.1} parent=15 // pred_region
          %s282 = sand.u32 %s23, 1
          %s283 = scalar_lea.sflag [#allocation9], %s282
          %s284 = sand.u32 %s125, 1
          %s285 = smul.addr %s284, 256
          %s286 = scalar_lea.vmem [#allocation8], %s285
          %288 = vsyncadd %s283, 0
          %s289 = smul.addr %s30, 32
          %s290 = smul.addr %s289, 8
          %s291 = scalar_lea.hbm %s3, %s290
          %s292 = sshll.u32 %s291, 4
          %s293 = int_to_ptr.hbm [resolvable:$true] %s292
          %s294 = sshll.u32 %s286, 4
          %s295 = int_to_ptr.vmem [resolvable:$true] %s294
          %300 = dma.hbm_to_vmem [thread:$0]  %s293, 4096, %s295, %s283, 128, 128, 8
        $region32: #{seq_experts_forward_em.1} parent=15 // pred_fallthru
          _
        // Predicated region
        $region33: #{seq_experts_forward_em.1} parent=15 // pred_check
          %p301 = pneg %p161
        $region34: #{seq_experts_forward_em.1} parent=15 // pred_check_branch
          %303 = sbr.rel (%p301) target = $region36
        $region35: #{seq_experts_forward_em.1} parent=15 // pred_region
          %s304 = sand.u32 %s23, 1
          %s305 = scalar_lea.sflag [#allocation9], %s304
          %s306 = sand.u32 %s151, 1
          %s307 = scalar_lea.vmem [#allocation10], %s306
          %309 = vsyncadd %s305, 0
          %s310 = scalar_lea.hbm %s4, %s30
          %s312 = sshll.u32 %s310, 4
          %s313 = int_to_ptr.hbm [resolvable:$true] %s312
          %s314 = sshll.u32 %s307, 4
          %s315 = int_to_ptr.vmem [resolvable:$true] %s314
          %317 = dma.hbm_to_vmem [thread:$0]  %s313, 16, %s315, %s305
        $region36: #{seq_experts_forward_em.1} parent=15 // pred_fallthru
          _
      $region16: #{seq_experts_forward_em.1} parent=5 // pred_fallthru
        _
      %p318 = scmp.le.s32.totalorder 1, %s23
      %p319 = scmp.lt.s32.totalorder %s23, 5
      %p320 = pnand %p318, %p319
      %p321 = pneg %p320
      // Predicated region
      $region37: #{seq_experts_forward_em.1} parent=5 // pred_check
        _
      $region38: #{seq_experts_forward_em.1} parent=5 // pred_check_branch
        %323 = sbr.rel (%p320) target = $region40
      $region39: #{seq_experts_forward_em.1} parent=5 // pred_region
        %s324 = ssub.s32 %s23, 1
        %s325 = sand.u32 %s50, 1
        %s326 = scalar_lea.sflag [#allocation3], %s325
        %s327 = sand.u32 %s50, 1
        %s328 = smul.addr %s327, 32
        %s329 = scalar_lea.vmem [#allocation2], %s328
        // Predicated region
        $region41: #{seq_experts_forward_em.1} parent=39 // pred_check
          %p330 = pneg %p63
        $region42: #{seq_experts_forward_em.1} parent=39 // pred_check_branch
          %332 = sbr.rel (%p330) target = $region44
        $region43: #{seq_experts_forward_em.1} parent=39 // pred_region
          %334 = dma.done %s326, 512
        $region44: #{seq_experts_forward_em.1} parent=39 // pred_fallthru
          _
        %s335 = sand.u32 %s28, 1
        %s336 = scalar_lea.sflag [#allocation6], %s335
        %s337 = sand.u32 %s76, 1
        %s338 = smul.addr %s337, 256
        %s339 = scalar_lea.vmem [#allocation5], %s338
        // Predicated region
        $region45: #{seq_experts_forward_em.1} parent=39 // pred_check
          %p340 = pneg %p89
        $region46: #{seq_experts_forward_em.1} parent=39 // pred_check_branch
          %342 = sbr.rel (%p340) target = $region48
        $region47: #{seq_experts_forward_em.1} parent=39 // pred_region
          %344 = dma.done %s336, 4096
        $region48: #{seq_experts_forward_em.1} parent=39 // pred_fallthru
          _
        %s345 = sand.u32 %s28, 1
        %s346 = scalar_lea.sflag [#allocation6], %s345
        %s347 = sand.u32 %s102, 1
        %s348 = smul.addr %s347, 2
        %s349 = scalar_lea.vmem [#allocation7], %s348
        // Predicated region
        $region49: #{seq_experts_forward_em.1} parent=39 // pred_check
          %p350 = pneg %p115
        $region50: #{seq_experts_forward_em.1} parent=39 // pred_check_branch
          %352 = sbr.rel (%p350) target = $region52
        $region51: #{seq_experts_forward_em.1} parent=39 // pred_region
          %354 = dma.done %s346, 32
        $region52: #{seq_experts_forward_em.1} parent=39 // pred_fallthru
          _
        %s355 = sand.u32 %s28, 1
        %s356 = scalar_lea.sflag [#allocation9], %s355
        %s357 = sand.u32 %s128, 1
        %s358 = smul.addr %s357, 256
        %s359 = scalar_lea.vmem [#allocation8], %s358
        // Predicated region
        $region53: #{seq_experts_forward_em.1} parent=39 // pred_check
          %p360 = pneg %p141
        $region54: #{seq_experts_forward_em.1} parent=39 // pred_check_branch
          %362 = sbr.rel (%p360) target = $region56
        $region55: #{seq_experts_forward_em.1} parent=39 // pred_region
          %364 = dma.done %s356, 4096
        $region56: #{seq_experts_forward_em.1} parent=39 // pred_fallthru
          _
        %s365 = sand.u32 %s28, 1
        %s366 = scalar_lea.sflag [#allocation9], %s365
        %s367 = sand.u32 %s154, 1
        %s368 = scalar_lea.vmem [#allocation10], %s367
        // Predicated region
        $region57: #{seq_experts_forward_em.1} parent=39 // pred_check
          %p369 = pneg %p167
        $region58: #{seq_experts_forward_em.1} parent=39 // pred_check_branch
          %371 = sbr.rel (%p369) target = $region60
        $region59: #{seq_experts_forward_em.1} parent=39 // pred_region
          %373 = dma.done %s366, 16
        $region60: #{seq_experts_forward_em.1} parent=39 // pred_fallthru
          _
        %s374 = sand.u32 %s50, 1
        %s375 = scalar_lea.sflag [#allocation3], %s374
        %s376 = sand.u32 %s50, 1
        %s377 = smul.addr %s376, 32
        %s378 = scalar_lea.vmem [#allocation2], %s377
        %p379 = pneg %p63
        %p380 = pneg %p60
        %s381 = sand.u32 %s28, 1
        %s382 = scalar_lea.sflag [#allocation6], %s381
        %s383 = sand.u32 %s76, 1
        %s384 = smul.addr %s383, 256
        %s385 = scalar_lea.vmem [#allocation5], %s384
        %p386 = pneg %p89
        %p387 = pneg %p86
        %s388 = sand.u32 %s28, 1
        %s389 = scalar_lea.sflag [#allocation6], %s388
        %s390 = sand.u32 %s102, 1
        %s391 = smul.addr %s390, 2
        %s392 = scalar_lea.vmem [#allocation7], %s391
        %p393 = pneg %p115
        %p394 = pneg %p112
        %s395 = sand.u32 %s28, 1
        %s396 = scalar_lea.sflag [#allocation9], %s395
        %s397 = sand.u32 %s128, 1
        %s398 = smul.addr %s397, 256
        %s399 = scalar_lea.vmem [#allocation8], %s398
        %p400 = pneg %p141
        %p401 = pneg %p138
        %s402 = sand.u32 %s28, 1
        %s403 = scalar_lea.sflag [#allocation9], %s402
        %s404 = sand.u32 %s154, 1
        %s405 = scalar_lea.vmem [#allocation10], %s404
        %p406 = pneg %p167
        %p407 = pneg %p164
        %p408 = pneg %p195
        %p409 = pneg %p192
        %s410 = sand.u32 %s182, 1
        %s411 = scalar_lea.sflag [#allocation4], %s410
        %s412 = sand.u32 %s182, 1
        %s413 = smul.addr %s412, 32
        %s414 = scalar_lea.vmem [#allocation11], %s413
        %s415 = smul.u32 4, %s33
        %s416 = smul.u32 4, %s33
        %v417 = vld [vmem:[%s329] sm:$0xff]
        %v418 = vld [vmem:[%s329 + $0x8] sm:$0xff]
        %v419 = vld [vmem:[%s329 + $0x10] sm:$0xff]
        %v420 = vld [vmem:[%s329 + $0x18] sm:$0xff]
        %v421 = vld [vmem:[%s339] sm:$0xff]
        %v422 = vld [vmem:[%s339 + $0x8] sm:$0xff]
        %v423 = vld [vmem:[%s339 + $0x10] sm:$0xff]
        %v424 = vld [vmem:[%s339 + $0x18] sm:$0xff]
        %v425 = vld [vmem:[%s339 + $0x20] sm:$0xff]
        %v426 = vld [vmem:[%s339 + $0x28] sm:$0xff]
        %v427 = vld [vmem:[%s339 + $0x30] sm:$0xff]
        %v428 = vld [vmem:[%s339 + $0x38] sm:$0xff]
        %v429 = vld [vmem:[%s339 + $0x40] sm:$0xff]
        %v430 = vld [vmem:[%s339 + $0x48] sm:$0xff]
        %v431 = vld [vmem:[%s339 + $0x50] sm:$0xff]
        %v432 = vld [vmem:[%s339 + $0x58] sm:$0xff]
        %v433 = vld [vmem:[%s339 + $0x60] sm:$0xff]
        %v434 = vld [vmem:[%s339 + $0x68] sm:$0xff]
        %v435 = vld [vmem:[%s339 + $0x70] sm:$0xff]
        %v436 = vld [vmem:[%s339 + $0x78] sm:$0xff]
        %v437 = vld [vmem:[%s339 + $0x80] sm:$0xff]
        %v438 = vld [vmem:[%s339 + $0x88] sm:$0xff]
        %v439 = vld [vmem:[%s339 + $0x90] sm:$0xff]
        %v440 = vld [vmem:[%s339 + $0x98] sm:$0xff]
        %v441 = vld [vmem:[%s339 + $0xa0] sm:$0xff]
        %v442 = vld [vmem:[%s339 + $0xa8] sm:$0xff]
        %v443 = vld [vmem:[%s339 + $0xb0] sm:$0xff]
        %v444 = vld [vmem:[%s339 + $0xb8] sm:$0xff]
        %v445 = vld [vmem:[%s339 + $0xc0] sm:$0xff]
        %v446 = vld [vmem:[%s339 + $0xc8] sm:$0xff]
        %v447 = vld [vmem:[%s339 + $0xd0] sm:$0xff]
        %v448 = vld [vmem:[%s339 + $0xd8] sm:$0xff]
        %v449 = vld [vmem:[%s339 + $0xe0] sm:$0xff]
        %v450 = vld [vmem:[%s339 + $0xe8] sm:$0xff]
        %v451 = vld [vmem:[%s339 + $0xf0] sm:$0xff]
        %v452 = vld [vmem:[%s339 + $0xf8] sm:$0xff]
        %v453 = vld [vmem:[%s349] sm:$0x3]
        %v455 = vperm.slane %v453, 0
        %v456 = vperm.slane %v453, 1
        %459 = vmatpush.msra.mxu0 %v451
        %460 = vmatpush.msra.mxu0 %v449
        %461 = vmatpush.msra.mxu0 %v447
        %462 = vmatpush.msra.mxu0 %v445
        %463 = vmatpush.msra.mxu0 %v443
        %464 = vmatpush.msra.mxu0 %v441
        %465 = vmatpush.msra.mxu0 %v439
        %466 = vmatpush.msra.mxu0 %v437
        %467 = vmatpush.msra.mxu0 %v435
        %468 = vmatpush.msra.mxu0 %v433
        %469 = vmatpush.msra.mxu0 %v431
        %470 = vmatpush.msra.mxu0 %v429
        %471 = vmatpush.msra.mxu0 %v427
        %472 = vmatpush.msra.mxu0 %v425
        %473 = vmatpush.msra.mxu0 %v423
        %474 = vmatpush.msra.mxu0 %v421
        %475 = vmatmul.f32.gmra.mxu0 %v417
        %v476 = vpop.f32.mrf.mxu0
        %v477 = vadd.f32 %v455, %v476
        %478 = vmatmul.f32.gmra.mxu0 %v418
        %v479 = vpop.f32.mrf.mxu0
        %v480 = vadd.f32 %v455, %v479
        %481 = vmatmul.f32.gmra.mxu0 %v419
        %v482 = vpop.f32.mrf.mxu0
        %v483 = vadd.f32 %v455, %v482
        %484 = vmatmul.f32.gmra.mxu0 %v420
        %v485 = vpop.f32.mrf.mxu0
        %v486 = vadd.f32 %v455, %v485
        %487 = vdwg.mxu0
        %488 = vmatpush.msra.mxu0 %v452
        %489 = vmatpush.msra.mxu0 %v450
        %490 = vmatpush.msra.mxu0 %v448
        %491 = vmatpush.msra.mxu0 %v446
        %492 = vmatpush.msra.mxu0 %v444
        %493 = vmatpush.msra.mxu0 %v442
        %494 = vmatpush.msra.mxu0 %v440
        %495 = vmatpush.msra.mxu0 %v438
        %496 = vmatpush.msra.mxu0 %v436
        %497 = vmatpush.msra.mxu0 %v434
        %498 = vmatpush.msra.mxu0 %v432
        %499 = vmatpush.msra.mxu0 %v430
        %500 = vmatpush.msra.mxu0 %v428
        %501 = vmatpush.msra.mxu0 %v426
        %502 = vmatpush.msra.mxu0 %v424
        %503 = vmatpush.msra.mxu0 %v422
        %504 = vmatmul.f32.gmra.mxu0 %v417
        %v505 = vpop.f32.mrf.mxu0
        %v506 = vadd.f32 %v456, %v505
        %507 = vmatmul.f32.gmra.mxu0 %v418
        %v508 = vpop.f32.mrf.mxu0
        %v509 = vadd.f32 %v456, %v508
        %510 = vmatmul.f32.gmra.mxu0 %v419
        %v511 = vpop.f32.mrf.mxu0
        %v512 = vadd.f32 %v456, %v511
        %513 = vmatmul.f32.gmra.mxu0 %v420
        %v514 = vpop.f32.mrf.mxu0
        %v515 = vadd.f32 %v456, %v514
        %516 = vdwg.mxu0
        %v517 = vmax.f32 %v477, 0.0
        %v518 = vmax.f32 %v506, 0.0
        %v519 = vmax.f32 %v480, 0.0
        %v520 = vmax.f32 %v509, 0.0
        %v521 = vmax.f32 %v483, 0.0
        %v522 = vmax.f32 %v512, 0.0
        %v523 = vmax.f32 %v486, 0.0
        %v524 = vmax.f32 %v515, 0.0
        %v525 = vld [vmem:[%s359] sm:$0xff]
        %v526 = vld [vmem:[%s359 + $0x8] sm:$0xff]
        %v527 = vld [vmem:[%s359 + $0x10] sm:$0xff]
        %v528 = vld [vmem:[%s359 + $0x18] sm:$0xff]
        %v529 = vld [vmem:[%s359 + $0x20] sm:$0xff]
        %v530 = vld [vmem:[%s359 + $0x28] sm:$0xff]
        %v531 = vld [vmem:[%s359 + $0x30] sm:$0xff]
        %v532 = vld [vmem:[%s359 + $0x38] sm:$0xff]
        %v533 = vld [vmem:[%s359 + $0x40] sm:$0xff]
        %v534 = vld [vmem:[%s359 + $0x48] sm:$0xff]
        %v535 = vld [vmem:[%s359 + $0x50] sm:$0xff]
        %v536 = vld [vmem:[%s359 + $0x58] sm:$0xff]
        %v537 = vld [vmem:[%s359 + $0x60] sm:$0xff]
        %v538 = vld [vmem:[%s359 + $0x68] sm:$0xff]
        %v539 = vld [vmem:[%s359 + $0x70] sm:$0xff]
        %v540 = vld [vmem:[%s359 + $0x78] sm:$0xff]
        %v541 = vld [vmem:[%s359 + $0x80] sm:$0xff]
        %v542 = vld [vmem:[%s359 + $0x88] sm:$0xff]
        %v543 = vld [vmem:[%s359 + $0x90] sm:$0xff]
        %v544 = vld [vmem:[%s359 + $0x98] sm:$0xff]
        %v545 = vld [vmem:[%s359 + $0xa0] sm:$0xff]
        %v546 = vld [vmem:[%s359 + $0xa8] sm:$0xff]
        %v547 = vld [vmem:[%s359 + $0xb0] sm:$0xff]
        %v548 = vld [vmem:[%s359 + $0xb8] sm:$0xff]
        %v549 = vld [vmem:[%s359 + $0xc0] sm:$0xff]
        %v550 = vld [vmem:[%s359 + $0xc8] sm:$0xff]
        %v551 = vld [vmem:[%s359 + $0xd0] sm:$0xff]
        %v552 = vld [vmem:[%s359 + $0xd8] sm:$0xff]
        %v553 = vld [vmem:[%s359 + $0xe0] sm:$0xff]
        %v554 = vld [vmem:[%s359 + $0xe8] sm:$0xff]
        %v555 = vld [vmem:[%s359 + $0xf0] sm:$0xff]
        %v556 = vld [vmem:[%s359 + $0xf8] sm:$0xff]
        %v557 = vld [vmem:[%s368] sm:$0x1]
        %v559 = vperm.slane %v557, 0
        %561 = vmatpush.msra.mxu0 %v540
        %562 = vmatpush.msra.mxu0 %v539
        %563 = vmatpush.msra.mxu0 %v538
        %564 = vmatpush.msra.mxu0 %v537
        %565 = vmatpush.msra.mxu0 %v536
        %566 = vmatpush.msra.mxu0 %v535
        %567 = vmatpush.msra.mxu0 %v534
        %568 = vmatpush.msra.mxu0 %v533
        %569 = vmatpush.msra.mxu0 %v532
        %570 = vmatpush.msra.mxu0 %v531
        %571 = vmatpush.msra.mxu0 %v530
        %572 = vmatpush.msra.mxu0 %v529
        %573 = vmatpush.msra.mxu0 %v528
        %574 = vmatpush.msra.mxu0 %v527
        %575 = vmatpush.msra.mxu0 %v526
        %576 = vmatpush.msra.mxu0 %v525
        %577 = vmatmul.f32.gmra.mxu0 %v517
        %v578 = vpop.f32.mrf.mxu0
        %v579 = vadd.f32 %v559, %v578
        %580 = vmatmul.f32.gmra.mxu0 %v519
        %v581 = vpop.f32.mrf.mxu0
        %v582 = vadd.f32 %v559, %v581
        %583 = vmatmul.f32.gmra.mxu0 %v521
        %v584 = vpop.f32.mrf.mxu0
        %v585 = vadd.f32 %v559, %v584
        %586 = vmatmul.f32.gmra.mxu0 %v523
        %v587 = vpop.f32.mrf.mxu0
        %v588 = vadd.f32 %v559, %v587
        %589 = vdwg.mxu0
        %590 = vmatpush.msra.mxu0 %v556
        %591 = vmatpush.msra.mxu0 %v555
        %592 = vmatpush.msra.mxu0 %v554
        %593 = vmatpush.msra.mxu0 %v553
        %594 = vmatpush.msra.mxu0 %v552
        %595 = vmatpush.msra.mxu0 %v551
        %596 = vmatpush.msra.mxu0 %v550
        %597 = vmatpush.msra.mxu0 %v549
        %598 = vmatpush.msra.mxu0 %v548
        %599 = vmatpush.msra.mxu0 %v547
        %600 = vmatpush.msra.mxu0 %v546
        %601 = vmatpush.msra.mxu0 %v545
        %602 = vmatpush.msra.mxu0 %v544
        %603 = vmatpush.msra.mxu0 %v543
        %604 = vmatpush.msra.mxu0 %v542
        %605 = vmatpush.msra.mxu0 %v541
        %606 = vmatmul.f32.gmra.mxu0 %v518
        %v607 = vpop.f32.mrf.mxu0
        %v608 = vadd.f32 %v579, %v607
        %609 = vmatmul.f32.gmra.mxu0 %v520
        %v610 = vpop.f32.mrf.mxu0
        %v611 = vadd.f32 %v582, %v610
        %612 = vmatmul.f32.gmra.mxu0 %v522
        %v613 = vpop.f32.mrf.mxu0
        %v614 = vadd.f32 %v585, %v613
        %615 = vmatmul.f32.gmra.mxu0 %v524
        %v616 = vpop.f32.mrf.mxu0
        %v617 = vadd.f32 %v588, %v616
        %618 = vdwg.mxu0
        %619 = vst [vmem:[%s414] sm:$0xff] %v608
        %620 = vst [vmem:[%s414 + $0x8] sm:$0xff] %v611
        %621 = vst [vmem:[%s414 + $0x10] sm:$0xff] %v614
        %622 = vst [vmem:[%s414 + $0x18] sm:$0xff] %v617
        %s623 = sand.u32 %s182, 1
        %s624 = scalar_lea.sflag [#allocation4], %s623
        %s625 = sand.u32 %s182, 1
        %s626 = smul.addr %s625, 32
        %s627 = scalar_lea.vmem [#allocation11], %s626
        // Predicated region
        $region61: #{seq_experts_forward_em.1} parent=39 // pred_check
          %p628 = pneg %p192
        $region62: #{seq_experts_forward_em.1} parent=39 // pred_check_branch
          %630 = sbr.rel (%p628) target = $region64
        $region63: #{seq_experts_forward_em.1} parent=39 // pred_region
          %s631 = smul.u32 4, %s33
          %633 = vsyncadd %s624, 0
          %s634 = smul.addr %s32, 4
          %s635 = sadd.s32 %s631, %s634
          %s636 = smul.addr %s635, 8
          %s637 = scalar_lea.hbm %s5, %s636
          %s638 = sshll.u32 %s627, 4
          %s639 = int_to_ptr.vmem [resolvable:$true] %s638
          %s640 = sshll.u32 %s637, 4
          %s641 = int_to_ptr.hbm [resolvable:$true] %s640
          %646 = dma.vmem_to_hbm [thread:$0]  %s639, 512, %s641, %s624, 128, 128, 8
        $region64: #{seq_experts_forward_em.1} parent=39 // pred_fallthru
          _
      $region40: #{seq_experts_forward_em.1} parent=5 // pred_fallthru
        _
      %p647 = scmp.le.s32.totalorder 2, %s23
      // Predicated region
      $region65: #{seq_experts_forward_em.1} parent=5 // pred_check
        %p648 = pneg %p647
      $region66: #{seq_experts_forward_em.1} parent=5 // pred_check_branch
        %650 = sbr.rel (%p648) target = $region68
      $region67: #{seq_experts_forward_em.1} parent=5 // pred_region
        %s651 = ssub.s32 %s23, 2
        // Predicated region
        $region69: #{seq_experts_forward_em.1} parent=67 // pred_check
          %p652 = pneg %p198
        $region70: #{seq_experts_forward_em.1} parent=67 // pred_check_branch
          %654 = sbr.rel (%p652) target = $region72
        $region71: #{seq_experts_forward_em.1} parent=67 // pred_region
          %s655 = sand.u32 %s183, 1
          %s656 = scalar_lea.sflag [#allocation4], %s655
          %s657 = sand.u32 %s183, 1
          %s658 = smul.addr %s657, 32
          %s659 = scalar_lea.vmem [#allocation11], %s658
          %661 = dma.done %s656, 512
        $region72: #{seq_experts_forward_em.1} parent=67 // pred_fallthru
          _
      $region68: #{seq_experts_forward_em.1} parent=5 // pred_fallthru
        _
    $region6: #{seq_experts_forward_em.1} parent=1 // loop_footer
      %s27 = sadd.s32 1, %s23
    $region7: #{seq_experts_forward_em.1} parent=1 // loop_footer_branch
      %22 = sbr.rel target = $region3
    $region8: #{seq_experts_forward_em.1} parent=1 // loop_exit
      _
    %662 = vsyncpa [#allocation3], 1
    %s663 = scalar_lea.sflag [#allocation3], 1
    %664 = vsyncpa %s663, 1
    %665 = vsyncpa [#allocation6], 1
    %s666 = scalar_lea.sflag [#allocation6], 1
    %667 = vsyncpa %s666, 1
    %668 = vsyncpa [#allocation9], 1
    %s669 = scalar_lea.sflag [#allocation9], 1
    %670 = vsyncpa %s669, 1
    %671 = vsyncpa [#allocation4], 1
    %s672 = scalar_lea.sflag [#allocation4], 1
    %673 = vsyncpa %s672, 1

</llo_original>
